<compile_context>
chip_gen: v6e
topology: v6e:2x2x1
jax: 0.10.0
libtpu: 0.0.40
codegen_flags: <defaults>
</compile_context>

<pallas_src>
import functools

import jax
import jax.numpy as jnp
from jax.experimental import pallas as pl
from jax.experimental.pallas import tpu as pltpu


def _emotion_head_kernel(frames_ref, wfc_ref, b_ref, out_ref, acc_ref, *,
                         time_tile, inv_total_time):
    """Fused: streaming frame mean-pool -> fused projection+classifier.

    frames_ref : [Bt, Tt, F]   time-block of framed audio features
    wfc_ref    : [F, Cp]       fused (feature-proj @ classifier.T) weight,
                               class axis zero-padded to a lane multiple
    b_ref      : [1, Cp]       classifier bias, lane-padded
    out_ref    : [Bt, Cp]      logits (padded class axis)
    acc_ref    : [Bt, 8, F] f32  running (pre-scaled) partial mean over time
    """
    t = pl.program_id(1)

    @pl.when(t == 0)
    def _init():
        acc_ref[...] = jnp.zeros_like(acc_ref)

    bt = acc_ref.shape[0]
    f = acc_ref.shape[2]

    # VPU-only accumulation: fold the time tile into (Tt//8, 8) chunks; the
    # sum over the chunk axis is elementwise vreg adds (VALU slots), not an
    # XLU cross-sublane reduce.  Pre-scaling each partial by 1/T keeps the
    # accumulator well-conditioned at real (long) sequence lengths.
    fr = frames_ref[...].reshape(bt, time_tile // 8, 8, f)
    acc_ref[...] += jnp.sum(fr, axis=1) * inv_total_time          # [Bt, 8, F]

    @pl.when(t == pl.num_programs(1) - 1)
    def _finalize():
        # Single 8 -> 1 sublane reduce (XLU), done once per batch block.
        pooled = jnp.sum(acc_ref[...], axis=1)                    # [Bt, F]
        # One lane-dense MXU matmul with the fused weight.
        # TODO(synk): valid only while the encoder stand-in is linear.
        logits = jnp.dot(pooled, wfc_ref[...],
                         preferred_element_type=jnp.float32) + b_ref[...]
        out_ref[...] = logits.astype(out_ref.dtype)                # [Bt, Cp]


def _pick_time_tile(T, batch_tile, F, *, itemsize=4,
                    target_bytes=4 << 20, min_steps=4):
    """Largest multiple-of-8 divisor of T such that the double-buffered
    frames block stays around `target_bytes` and the time grid has at least
    `min_steps` steps (so the HBM frame stream pipelines behind compute)."""
    assert T % 8 == 0
    cap = (target_bytes // (2 * batch_tile * F * itemsize)) // 8 * 8
    cap = max(8, min(cap, T))
    if T // min_steps >= 8:
        cap = min(cap, (T // min_steps) // 8 * 8)
    tile = 8
    for cand in range(8, cap + 1, 8):
        if T % cand == 0:
            tile = cand
    return tile


def wav2vec2_emotion_forward(input_values, wf, wc, bc, *, frame_len,
                             time_tile=None, batch_tile=None):
    """input_values: [B, L] raw audio; returns logits [B, num_classes]."""
    B, L = input_values.shape
    F = frame_len
    assert L % F == 0
    T = L // F
    H = wf.shape[1]
    C = wc.shape[0]
    C_pad = 128 * pl.cdiv(C, 128)          # lane-dense (unmasked) output store
    itemsize = 4

    # ---- wrapper-side padding (free layout plumbing) -----------------------
    # Batch: multiple of 8 for sublane-full tiles; when >= 16, a multiple of
    # 16 so it splits into two batch blocks (both TensorCores busy on v7x).
    B_pad = 8 * pl.cdiv(B, 8)
    if B_pad >= 16:
        B_pad = 16 * pl.cdiv(B_pad, 16)
    # Time: multiple of 8 (zero padding; the mean divides by the true T).
    T_pad = 8 * pl.cdiv(T, 8)

    frames = input_values.reshape(B, T, F)
    if (B_pad, T_pad) != (B, T):
        frames = jnp.zeros((B_pad, T_pad, F), frames.dtype).at[:B, :T].set(frames)

    # ---- tile selection -----------------------------------------------------
    if batch_tile is None:
        if B_pad >= 16 and (B_pad // 2) % 8 == 0:
            batch_tile = B_pad // 2        # 2 batch blocks -> megacore on v7x
        else:
            batch_tile = B_pad
    assert B_pad % batch_tile == 0 and batch_tile % 8 == 0

    if time_tile is None:
        time_tile = _pick_time_tile(T_pad, batch_tile, F, itemsize=itemsize)
    assert T_pad % time_tile == 0 and time_tile % 8 == 0

    # ---- fused weights (stand-in encoder is linear) ------------------------
    # Wfused = wf @ wc.T : [F, C], computed once at full precision; class axis
    # zero-padded to C_pad so the kernel's output store is lane-dense.
    # TODO(synk): only valid for the linear stand-in encoder.
    wfused = jnp.dot(wf, wc.T, precision=jax.lax.Precision.HIGHEST)
    wfc = jnp.zeros((F, C_pad), dtype=jnp.float32).at[:, :C].set(wfused)
    bias = jnp.zeros((1, C_pad), dtype=jnp.float32).at[0, :C].set(bc)

    grid = (B_pad // batch_tile, T_pad // time_tile)
    kernel = functools.partial(_emotion_head_kernel,
                               time_tile=time_tile,
                               inv_total_time=1.0 / float(T))

    # ---- explicit VMEM budget (v7x: 64 MiB physical / 32 MiB scoped default)
    frames_bytes = 2 * batch_tile * time_tile * F * itemsize   # double-buffered
    weight_bytes = 2 * F * C_pad * itemsize
    bias_bytes = 2 * 8 * C_pad * itemsize                      # sublane-padded
    out_bytes = 2 * batch_tile * C_pad * itemsize
    acc_bytes = batch_tile * 8 * F * itemsize
    vmem_needed = frames_bytes + weight_bytes + bias_bytes + out_bytes + acc_bytes
    vmem_limit = int(min(max(2 * vmem_needed, 4 << 20), 48 << 20))

    cost = pl.CostEstimate(
        flops=2 * B_pad * (T_pad * F + F * C_pad),
        transcendentals=0,
        bytes_accessed=(B_pad * T_pad * F + F * C_pad + C_pad
                        + B_pad * C_pad) * itemsize,
    )

    logits_pad = pl.pallas_call(
        kernel,
        out_shape=jax.ShapeDtypeStruct((B_pad, C_pad), jnp.float32),
        grid_spec=pltpu.PrefetchScalarGridSpec(
            num_scalar_prefetch=0,
            grid=grid,
            in_specs=[
                pl.BlockSpec((batch_tile, time_tile, F), lambda b, t: (b, t, 0)),
                pl.BlockSpec((F, C_pad), lambda b, t: (0, 0)),
                pl.BlockSpec((1, C_pad), lambda b, t: (0, 0)),
            ],
            out_specs=pl.BlockSpec((batch_tile, C_pad), lambda b, t: (b, 0)),
            scratch_shapes=[pltpu.VMEM((batch_tile, 8, F), jnp.float32)],
        ),
        compiler_params=pltpu.CompilerParams(
            # Batch axis is independent (megacore-shardable on v7x); the time
            # axis is the streaming reduction and must stay "arbitrary".
            dimension_semantics=("parallel", "arbitrary"),
            vmem_limit_bytes=vmem_limit,
        ),
        cost_estimate=cost,
    )(frames, wfc, bias)

    return logits_pad[:B, :C]


def reference_forward(input_values, wf, wc, bc, *, frame_len):
    """Pure-JAX reference matching the PyTorch forward semantics."""
    B, L = input_values.shape
    T = L // frame_len
    frames = input_values.reshape(B, T, frame_len)
    hidden = jnp.einsum("btf,fh->bth", frames, wf,
                        precision=jax.lax.Precision.HIGHEST)   # last_hidden_state
    pooled = hidden.mean(axis=1)                               # mean(dim=1)
    return jnp.dot(pooled, wc.T,
                   precision=jax.lax.Precision.HIGHEST) + bc   # classifier


if __name__ == "__main__":
    num_classes = 7

    # Small, module-consistent, lane-dense stand-in shapes.
    B = 4             # batch
    frame_len = 128   # stand-in conv-encoder receptive field per frame
    T = 128           # number of time frames (last_hidden_state seq length)
    H = 128           # stand-in hidden size (real wav2vec2: 768/1024)
    L = T * frame_len

    key = jax.random.PRNGKey(0)
    k_in, k_wf, k_wc = jax.random.split(key, 3)

    # Raw audio input_values [B, L].
    input_values = jax.random.normal(k_in, (B, L), dtype=jnp.float32)

    # Deterministic parameter init.
    # Synthetic feature projection (stands in for the wav2vec2 base model).
    wf = jax.random.normal(k_wf, (frame_len, H), dtype=jnp.float32) * 0.05
    # Classifier: nn.init.normal_(weight, mean=0, std=0.02); bias = 0.
    wc = jax.random.normal(k_wc, (num_classes, H), dtype=jnp.float32) * 0.02
    bc = jnp.zeros((num_classes,), dtype=jnp.float32)

    ref = reference_forward(input_values, wf, wc, bc, frame_len=frame_len)

    # Default path: auto-picked streaming time tile (>= 4 pipelined steps).
    logits = wav2vec2_emotion_forward(
        input_values, wf, wc, bc, frame_len=frame_len)
    logits = jax.block_until_ready(logits)
    assert logits.shape == (B, num_classes), logits.shape
    assert jnp.allclose(logits, ref, atol=2e-4, rtol=2e-4), (
        f"max abs err {jnp.max(jnp.abs(logits - ref))}")

    # Single-block path (grid collapses along time) must agree as well.
    logits_1blk = wav2vec2_emotion_forward(
        input_values, wf, wc, bc, frame_len=frame_len, time_tile=T)
    logits_1blk = jax.block_until_ready(logits_1blk)
    assert jnp.allclose(logits_1blk, ref, atol=2e-4, rtol=2e-4), (
        f"max abs err (single block) {jnp.max(jnp.abs(logits_1blk - ref))}")

    # Larger batch exercising the padded, 2-block batch axis (v7x megacore).
    B2 = 20
    iv2 = jax.random.normal(jax.random.PRNGKey(1), (B2, L), dtype=jnp.float32)
    ref2 = reference_forward(iv2, wf, wc, bc, frame_len=frame_len)
    logits2 = wav2vec2_emotion_forward(iv2, wf, wc, bc, frame_len=frame_len)
    logits2 = jax.block_until_ready(logits2)
    assert logits2.shape == (B2, num_classes), logits2.shape
    assert jnp.allclose(logits2, ref2, atol=2e-4, rtol=2e-4), (
        f"max abs err (batched) {jnp.max(jnp.abs(logits2 - ref2))}")

    print("KERNEL_OK")
</pallas_src>

<mosaic_0001>
module attributes {stable_mosaic.version = 11 : i64} {
  func.func @_emotion_head_kernel(%arg0: i32, %arg1: i32, %arg2: memref<8x32x128xf32, #tpu.memory_space<vmem>>, %arg3: memref<128x128xf32, #tpu.memory_space<vmem>>, %arg4: memref<1x128xf32, #tpu.memory_space<vmem>>, %arg5: memref<8x128xf32, #tpu.memory_space<vmem>>, %arg6: memref<8x8x128xf32, #tpu.memory_space<vmem>>) attributes {dimension_semantics = [#tpu.dimension_semantics<parallel>, #tpu.dimension_semantics<arbitrary>], iteration_bounds = array<i64: 1, 4>, scalar_prefetch = 0 : i64, scratch_operands = 1 : i64, tpu.core_type = #tpu.core_type<tc>, window_params = [{transform_indices = @transform_0, window_bounds = array<i64: 8, 32, 128>}, {pipeline_mode = #tpu.pipeline_mode<synchronous>, transform_indices = @transform_1, window_bounds = array<i64: 128, 128>}, {pipeline_mode = #tpu.pipeline_mode<synchronous>, transform_indices = @transform_2, window_bounds = array<i64: 1, 128>}, {transform_indices = @transform_3, window_bounds = array<i64: 8, 128>}]} {
    %c0_i32 = arith.constant 0 : i32
    %0 = arith.cmpi eq, %arg1, %c0_i32 : i32
    %1 = arith.extui %0 : i1 to i32
    %c0_i32_0 = arith.constant 0 : i32
    %2 = arith.cmpi ne, %1, %c0_i32_0 : i32
    scf.if %2 {
      %cst_11 = arith.constant 0.000000e+00 : f32
      %14 = vector.broadcast %cst_11 : f32 to vector<8x8x128xf32>
      %c0_12 = arith.constant 0 : index
      %c0_13 = arith.constant 0 : index
      %c0_14 = arith.constant 0 : index
      %15 = vector.load %arg6[%c0_12, %c0_13, %c0_14] : memref<8x8x128xf32, #tpu.memory_space<vmem>>, vector<8x8x128xf32>
      tpu.vector_store %arg6[%c0_12, %c0_13, %c0_14], %14 {strides = array<i32>} : memref<8x8x128xf32, #tpu.memory_space<vmem>>, vector<8x8x128xf32>,
    } else {
    }
    %c0 = arith.constant 0 : index
    %c0_1 = arith.constant 0 : index
    %c0_2 = arith.constant 0 : index
    %3 = vector.load %arg2[%c0, %c0_1, %c0_2] : memref<8x32x128xf32, #tpu.memory_space<vmem>>, vector<8x32x128xf32>
    %4 = vector.shape_cast %3 : vector<8x32x128xf32> to vector<8x4x8x128xf32>
    %c0_3 = arith.constant 0 : index
    %c0_4 = arith.constant 0 : index
    %c0_5 = arith.constant 0 : index
    %5 = vector.load %arg6[%c0_3, %c0_4, %c0_5] : memref<8x8x128xf32, #tpu.memory_space<vmem>>, vector<8x8x128xf32>
    %cst = arith.constant dense<0.000000e+00> : vector<8x8x128xf32>
    %6 = vector.multi_reduction <add>, %4, %cst [1] : vector<8x4x8x128xf32> to vector<8x8x128xf32>
    %cst_6 = arith.constant 7.812500e-03 : f32
    %7 = vector.broadcast %cst_6 : f32 to vector<8x8x128xf32>
    %8 = arith.mulf %6, %7 : vector<8x8x128xf32>
    %9 = arith.addf %5, %8 : vector<8x8x128xf32>
    %c0_7 = arith.constant 0 : index
    %c0_8 = arith.constant 0 : index
    %c0_9 = arith.constant 0 : index
    %10 = vector.load %arg6[%c0_7, %c0_8, %c0_9] : memref<8x8x128xf32, #tpu.memory_space<vmem>>, vector<8x8x128xf32>
    tpu.vector_store %arg6[%c0_7, %c0_8, %c0_9], %9 {strides = array<i32>} : memref<8x8x128xf32, #tpu.memory_space<vmem>>, vector<8x8x128xf32>,
    %c3_i32 = arith.constant 3 : i32
    %11 = arith.cmpi eq, %arg1, %c3_i32 : i32
    %12 = arith.extui %11 : i1 to i32
    %c0_i32_10 = arith.constant 0 : i32
    %13 = arith.cmpi ne, %12, %c0_i32_10 : i32
    scf.if %13 {
      %c0_11 = arith.constant 0 : index
      %c0_12 = arith.constant 0 : index
      %c0_13 = arith.constant 0 : index
      %14 = vector.load %arg6[%c0_11, %c0_12, %c0_13] : memref<8x8x128xf32, #tpu.memory_space<vmem>>, vector<8x8x128xf32>
      %cst_14 = arith.constant dense<0.000000e+00> : vector<8x128xf32>
      %15 = vector.multi_reduction <add>, %14, %cst_14 [1] : vector<8x8x128xf32> to vector<8x128xf32>
      %c0_15 = arith.constant 0 : index
      %c0_16 = arith.constant 0 : index
      %16 = vector.load %arg3[%c0_15, %c0_16] : memref<128x128xf32, #tpu.memory_space<vmem>>, vector<128x128xf32>
      %cst_17 = arith.constant dense<0.000000e+00> : vector<8x128xf32>
      %17 = tpu.matmul %15, %16, %cst_17 {dimension_numbers = #tpu.dot_dimension_numbers<[1], [0], [0], [1], [0, 0, 1, 1], [], []>} : vector<8x128xf32>, vector<128x128xf32>, vector<8x128xf32> -> vector<8x128xf32>
      %c0_18 = arith.constant 0 : index
      %c0_19 = arith.constant 0 : index
      %18 = vector.load %arg4[%c0_18, %c0_19] : memref<1x128xf32, #tpu.memory_space<vmem>>, vector<1x128xf32>
      %19 = vector.broadcast %18 : vector<1x128xf32> to vector<8x128xf32>
      %20 = arith.addf %17, %19 : vector<8x128xf32>
      %c0_20 = arith.constant 0 : index
      %c0_21 = arith.constant 0 : index
      %21 = vector.load %arg5[%c0_20, %c0_21] : memref<8x128xf32, #tpu.memory_space<vmem>>, vector<8x128xf32>
      tpu.vector_store %arg5[%c0_20, %c0_21], %20 {strides = array<i32>} : memref<8x128xf32, #tpu.memory_space<vmem>>, vector<8x128xf32>,
    } else {
    }
    return
  }
  func.func @transform_0(%arg0: i32, %arg1: i32) -> (i32, i32, i32) {
    %c0_i32 = arith.constant 0 : i32
    %c0_i32_0 = arith.constant 0 : i32
    return %arg0, %arg1, %c0_i32 : i32, i32, i32
  }
  func.func @transform_1(%arg0: i32, %arg1: i32) -> (i32, i32) {
    %c0_i32 = arith.constant 0 : i32
    %c0_i32_0 = arith.constant 0 : i32
    %c0_i32_1 = arith.constant 0 : i32
    return %c0_i32, %c0_i32_0 : i32, i32
  }
  func.func @transform_2(%arg0: i32, %arg1: i32) -> (i32, i32) {
    %c0_i32 = arith.constant 0 : i32
    %c0_i32_0 = arith.constant 0 : i32
    %c0_i32_1 = arith.constant 0 : i32
    return %c0_i32, %c0_i32_0 : i32, i32
  }
  func.func @transform_3(%arg0: i32, %arg1: i32) -> (i32, i32) {
    %c0_i32 = arith.constant 0 : i32
    %c0_i32_0 = arith.constant 0 : i32
    return %arg0, %c0_i32 : i32, i32
  }
}

</mosaic_0001>

<llo_original>
// kernel: tpu_custom_call.1
$region0: #{tpu_custom_call.1}
  #allocation0 [shape = 'u32[]', space=smem, size = 0x4, offset = 0x4, fixed_abs, tag = 'smem constant byte address 0x4 - core index']
  #allocation1 [shape = 'u32[144,128]{1,0:T(1,128)}', space=vmem, size = 0x12000, scoped, tag = 'internal scratch']
  #allocation2 [shape = 'f32[8,8,128]{2,1,0:T(8,128)}', space=vmem, size = 0x8000, scoped, tag = 'scratch operand']
  #allocation9 [shape = 's32[]', space=sflag, size = 0x4, offset = 0, fixed_abs, tag = 'sflag constant byte address 0x0 - dummy sync flag']
  %s0 = inlined_call_operand.hbm [shape: f32[8,128,128], index: 0, kind: input, shape index: {}]
  %s1 = inlined_call_operand.hbm [shape: f32[128,128], index: 1, kind: input, shape index: {}]
  %s2 = inlined_call_operand.vmem [shape: f32[1,128], index: 2, kind: input, shape index: {}]
  %s3 = inlined_call_operand.hbm [shape: f32[8,128], index: 3, kind: output, shape index: {}]
  %s4 = sld [smem:[#allocation0]]
  $region61: #{tpu_custom_call.1} parent=0
    _
  %s6 = ssub.s32 1, %s4
  %s7 = scalar_select 0, %s6, %s4
  $region1: #{tpu_custom_call.1} parent=0
    #allocation3 [shape = 'u8[262144]{0}', space=vmem, size = 0x40000, scoped, tag = 'input window, operand 0']
    #allocation4 [shape = 's32[2]{0}', space=sflag, size = 0x8, scoped, tag = 'scoped memory for tpu_custom_call.1']
    #allocation5 [shape = 's32[2]{0}', space=sflag, size = 0x8, scoped, tag = 'scoped memory for tpu_custom_call.1']
    #allocation6 [shape = 'u8[65536]{0}', space=vmem, size = 0x10000, scoped, tag = 'input window, operand 1, single buffered']
    #allocation7 [shape = 's32[1]{0}', space=sflag, size = 0x4, scoped, tag = 'scoped memory for tpu_custom_call.1']
    #allocation8 [shape = 'u8[4096]{0}', space=vmem, size = 0x1000, scoped, tag = 'output window, operand 0, single buffered']
    %8 = vsyncpa [#allocation4], 0
    %s9 = scalar_lea.sflag [#allocation4], 1
    %10 = vsyncpa %s9, 0
    %11 = vsyncpa [#allocation7], 0
    %12 = vsyncpa [#allocation5], 0
    loop: start=0, step=1, limit=6
    $region2: #{tpu_custom_call.1} parent=1 // loop_pre_header
      _
    $region3: #{tpu_custom_call.1} parent=1 // loop_header
      %s14 = sphi 0, %s18
      %p15 = scmp.ge.s32.totalorder %s14, 6
      %s21 = sphi 0, %s33
      %s22 = sphi 0, %s29
      %s23 = sphi 0, %s21
      %s24 = sphi 0, %s22
      %s25 = sphi 0, %s23
      %s26 = sphi 0, %s24
      %s38 = sphi 0, %s40
      %s41 = sphi 0, %s38
      %s42 = sphi 0, %s41
      %s58 = sphi 0, %s42
      %s62 = sphi 0, %s62
      %s64 = sphi 0, %s62
      %s65 = sphi 0, %s64
      %s79 = sphi 0, %s65
      %s83 = sphi 0, %s83
      %s85 = sphi 0, %s83
      %s86 = sphi 0, %s85
      %s100 = sphi 0, %s86
      %s106 = sphi 0, %s108
      %s109 = sphi 0, %s106
      %s110 = sphi 0, %s109
      %s126 = sphi 0, %s110
    $region4: #{tpu_custom_call.1} parent=1 // loop_header_branch
      %17 = sbr.rel (%p15) target = $region8
    $region5: #{tpu_custom_call.1} parent=1 // loop_body
      %s19 = ssub.s32 %s14, 1
      %s20 = ssub.s32 %s14, 2
      %s27 = sadd.s32 1, %s22
      %p28 = scmp.ge.s32.totalorder %s27, 4
      %s29 = scalar_select %p28, 0, %s27
      %s30 = sadd.s32 1, %s21
      %s31 = scalar_select %p28, %s30, %s21
      %p32 = scmp.ge.s32.totalorder %s31, 1
      %s33 = scalar_select %p32, 0, %s31
      %s34 = ssub.s32 %s21, %s33
      %s35 = ssub.s32 %s22, %s29
      %s36 = sor.u32 %s34, %s35
      %p37 = scmp.eq.s32.totalorder %s36, 0
      %s39 = sadd.s32 %s38, 1
      %s40 = scalar_select %p37, %s38, %s39
      %p43 = pneg %p37
      %p44 = scmp.eq.s32.totalorder %s14, 3
      %p45 = por %p43, %p44
      %p46 = scmp.ne.s32.totalorder %s38, %s41
      %p47 = scmp.eq.s32.totalorder %s14, 0
      %p48 = por %p46, %p47
      %p49 = scmp.ne.s32.totalorder %s38, %s41
      %p50 = scmp.eq.s32.totalorder %s19, 3
      %p51 = por %p49, %p50
      %p52 = scmp.ne.s32.totalorder %s41, %s42
      %p53 = scmp.eq.s32.totalorder %s19, 0
      %p54 = por %p52, %p53
      %p55 = scmp.ne.s32.totalorder %s41, %s42
      %p56 = scmp.eq.s32.totalorder %s20, 3
      %p57 = por %p55, %p56
      %p59 = scmp.ne.s32.totalorder %s42, %s58
      %p60 = scmp.eq.s32.totalorder %s20, 0
      %p61 = por %p59, %p60
      %s63 = sadd.s32 %s62, 1
      %p66 = scmp.eq.s32.totalorder %s14, 3
      %p67 = scmp.ne.s32.totalorder %s62, %s64
      %p68 = scmp.eq.s32.totalorder %s14, 0
      %p69 = por %p67, %p68
      %p70 = scmp.ne.s32.totalorder %s62, %s64
      %p71 = scmp.eq.s32.totalorder %s19, 3
      %p72 = por %p70, %p71
      %p73 = scmp.ne.s32.totalorder %s64, %s65
      %p74 = scmp.eq.s32.totalorder %s19, 0
      %p75 = por %p73, %p74
      %p76 = scmp.ne.s32.totalorder %s64, %s65
      %p77 = scmp.eq.s32.totalorder %s20, 3
      %p78 = por %p76, %p77
      %p80 = scmp.ne.s32.totalorder %s65, %s79
      %p81 = scmp.eq.s32.totalorder %s20, 0
      %p82 = por %p80, %p81
      %s84 = sadd.s32 %s83, 1
      %p87 = scmp.eq.s32.totalorder %s14, 3
      %p88 = scmp.ne.s32.totalorder %s83, %s85
      %p89 = scmp.eq.s32.totalorder %s14, 0
      %p90 = por %p88, %p89
      %p91 = scmp.ne.s32.totalorder %s83, %s85
      %p92 = scmp.eq.s32.totalorder %s19, 3
      %p93 = por %p91, %p92
      %p94 = scmp.ne.s32.totalorder %s85, %s86
      %p95 = scmp.eq.s32.totalorder %s19, 0
      %p96 = por %p94, %p95
      %p97 = scmp.ne.s32.totalorder %s85, %s86
      %p98 = scmp.eq.s32.totalorder %s20, 3
      %p99 = por %p97, %p98
      %p101 = scmp.ne.s32.totalorder %s86, %s100
      %p102 = scmp.eq.s32.totalorder %s20, 0
      %p103 = por %p101, %p102
      %s104 = ssub.s32 %s21, %s33
      %p105 = scmp.eq.s32.totalorder %s104, 0
      %s107 = sadd.s32 %s106, 1
      %s108 = scalar_select %p105, %s106, %s107
      %p111 = pneg %p105
      %p112 = scmp.eq.s32.totalorder %s14, 3
      %p113 = por %p111, %p112
      %p114 = scmp.ne.s32.totalorder %s106, %s109
      %p115 = scmp.eq.s32.totalorder %s14, 0
      %p116 = por %p114, %p115
      %p117 = scmp.ne.s32.totalorder %s106, %s109
      %p118 = scmp.eq.s32.totalorder %s19, 3
      %p119 = por %p117, %p118
      %p120 = scmp.ne.s32.totalorder %s109, %s110
      %p121 = scmp.eq.s32.totalorder %s19, 0
      %p122 = por %p120, %p121
      %p123 = scmp.ne.s32.totalorder %s109, %s110
      %p124 = scmp.eq.s32.totalorder %s20, 3
      %p125 = por %p123, %p124
      %p127 = scmp.ne.s32.totalorder %s110, %s126
      %p128 = scmp.eq.s32.totalorder %s20, 0
      %p129 = por %p127, %p128
      %p130 = scmp.le.s32.totalorder 1, %s14
      %p131 = scmp.lt.s32.totalorder %s14, 5
      %p132 = pnand %p130, %p131
      %p133 = pneg %p132
      // Predicated region
      $region9: #{tpu_custom_call.1} parent=5 // pred_check
        _
      $region10: #{tpu_custom_call.1} parent=5 // pred_check_branch
        %135 = sbr.rel (%p132) target = $region12
      $region11: #{tpu_custom_call.1} parent=5 // pred_region
        %s136 = ssub.s32 %s14, 1
        // Predicated region
        $region13: #{tpu_custom_call.1} parent=11 // pred_check
          %p137 = pneg %p75
        $region14: #{tpu_custom_call.1} parent=11 // pred_check_branch
          %139 = sbr.rel (%p137) target = $region16
        $region15: #{tpu_custom_call.1} parent=11 // pred_region
          %s141 = ssub.s32 2048, 2048
          %142 = vsyncadd [#allocation7], %s141
          %s143 = sshll.u32 [#allocation6], 4
          %s144 = int_to_ptr.vmem [resolvable:$true] %s143
          %149 = dma.hbm_to_vmem [thread:$0]  %s1, 2048, %s144, [#allocation7], 128, 128, 8
        $region16: #{tpu_custom_call.1} parent=11 // pred_fallthru
          _
        // Predicated region
        $region17: #{tpu_custom_call.1} parent=11 // pred_check
          %p150 = pneg %p96
        $region18: #{tpu_custom_call.1} parent=11 // pred_check_branch
          %152 = sbr.rel (%p150) target = $region20
        $region19: #{tpu_custom_call.1} parent=11 // pred_region
          _
        $region20: #{tpu_custom_call.1} parent=11 // pred_fallthru
          _
      $region12: #{tpu_custom_call.1} parent=5 // pred_fallthru
        _
      %p153 = scmp.lt.s32.totalorder %s14, 4
      // Predicated region
      $region21: #{tpu_custom_call.1} parent=5 // pred_check
        %p154 = pneg %p153
      $region22: #{tpu_custom_call.1} parent=5 // pred_check_branch
        %156 = sbr.rel (%p154) target = $region24
      $region23: #{tpu_custom_call.1} parent=5 // pred_region
        // Predicated region
        $region25: #{tpu_custom_call.1} parent=23 // pred_check
          %p157 = pneg %p48
        $region26: #{tpu_custom_call.1} parent=23 // pred_check_branch
          %159 = sbr.rel (%p157) target = $region28
        $region27: #{tpu_custom_call.1} parent=23 // pred_region
          #allocation10 [shape = 'u32[6]{0}', space=smem, size = 0x18, scoped, tag = 'DMA stride descriptor']
          %s160 = sand.u32 %s38, 1
          %s161 = scalar_lea.sflag [#allocation4], %s160
          %s162 = sand.u32 %s38, 1
          %s163 = smul.addr %s162, 256
          %s164 = scalar_lea.vmem [#allocation3], %s163
          %s165 = smul.u32 8, %s21
          %s166 = smul.u32 4, %s22
          %s168 = ssub.s32 4096, 4096
          %169 = vsyncadd %s161, %s168
          %s170 = smul.addr %s165, 16
          %s171 = sadd.s32 %s166, %s170
          %s172 = smul.addr %s171, 128
          %s173 = scalar_lea.hbm %s0, %s172
          %s175 = sshll.u32 1, 14
          %s176 = sxor.u32 4294967295, %s175
          %s178 = sld [smem:[#allocation0]]
          %s179 = sadd.s32 2, %s178
          %s181 = sshll.u32 7, 26
          %s182 = sxor.u32 4294967295, %s181
          %s183 = sand.u32 0, %s182
          %s184 = sshll.u32 %s179, 26
          %s185 = sor.u32 %s183, %s184
          %s186 = sshll.u32 %s164, 4
          %s187 = int_to_ptr.vmem [resolvable:$true] %s186
          %193 = sst [smem:[#allocation10]] 2048
          %s194 = scalar_lea.smem [#allocation10], 1
          %195 = sst [smem:[%s194]] 512
          %s196 = scalar_lea.smem [#allocation10], 2
          %197 = sst [smem:[%s196]] 4
          %s198 = scalar_lea.smem [#allocation10], 3
          %199 = sst [smem:[%s198]] 128
          %s200 = scalar_lea.smem [#allocation10], 4
          %201 = sst [smem:[%s200]] 128
          %s202 = scalar_lea.smem [#allocation10], 5
          %203 = sst [smem:[%s202]] 8
          %205 = dma.general %s173, 4096, %s187, %s161, 131072, [#allocation10], %s185, 0
        $region28: #{tpu_custom_call.1} parent=23 // pred_fallthru
          _
      $region24: #{tpu_custom_call.1} parent=5 // pred_fallthru
        _
      %p206 = scmp.le.s32.totalorder 1, %s14
      %p207 = scmp.lt.s32.totalorder %s14, 5
      %p208 = pnand %p206, %p207
      %p209 = pneg %p208
      // Predicated region
      $region29: #{tpu_custom_call.1} parent=5 // pred_check
        _
      $region30: #{tpu_custom_call.1} parent=5 // pred_check_branch
        %211 = sbr.rel (%p208) target = $region32
      $region31: #{tpu_custom_call.1} parent=5 // pred_region
        %s212 = ssub.s32 %s14, 1
        %s213 = sand.u32 %s41, 1
        %s214 = scalar_lea.sflag [#allocation4], %s213
        %s215 = sand.u32 %s41, 1
        %s216 = smul.addr %s215, 256
        %s217 = scalar_lea.vmem [#allocation3], %s216
        // Predicated region
        $region33: #{tpu_custom_call.1} parent=31 // pred_check
          %p218 = pneg %p54
        $region34: #{tpu_custom_call.1} parent=31 // pred_check_branch
          %220 = sbr.rel (%p218) target = $region36
        $region35: #{tpu_custom_call.1} parent=31 // pred_region
          %221 = dma.done %s214, 4096
        $region36: #{tpu_custom_call.1} parent=31 // pred_fallthru
          _
        // Predicated region
        $region37: #{tpu_custom_call.1} parent=31 // pred_check
          %p222 = pneg %p75
        $region38: #{tpu_custom_call.1} parent=31 // pred_check_branch
          %224 = sbr.rel (%p222) target = $region40
        $region39: #{tpu_custom_call.1} parent=31 // pred_region
          %225 = dma.done [#allocation7], 2048
        $region40: #{tpu_custom_call.1} parent=31 // pred_fallthru
          _
        %s226 = sand.u32 %s41, 1
        %s227 = scalar_lea.sflag [#allocation4], %s226
        %s228 = sand.u32 %s41, 1
        %s229 = smul.addr %s228, 256
        %s230 = scalar_lea.vmem [#allocation3], %s229
        %p231 = pneg %p54
        %p232 = pneg %p51
        %p233 = pneg %p75
        %p234 = pneg %p72
        %p235 = pneg %p96
        %p236 = pneg %p93
        %p237 = pneg %p122
        %p238 = pneg %p119
        %s239 = smul.u32 8, %s23
        %s240 = smul.u32 4, %s24
        %p241 = scmp.eq.s32.totalorder %s24, 0
        // Predicated region
        $region41: #{tpu_custom_call.1} parent=31 // pred_check
          %p242 = pneg %p241
        $region42: #{tpu_custom_call.1} parent=31 // pred_check_branch
          %244 = sbr.rel (%p242) target = $region44
        $region43: #{tpu_custom_call.1} parent=31 // pred_region
          %245 = vst [vmem:[#allocation2] sm:$0xff] 0.0
          %246 = vst [vmem:[#allocation2 + $0x8] sm:$0xff] 0.0
          %247 = vst [vmem:[#allocation2 + $0x10] sm:$0xff] 0.0
          %248 = vst [vmem:[#allocation2 + $0x18] sm:$0xff] 0.0
          %249 = vst [vmem:[#allocation2 + $0x20] sm:$0xff] 0.0
          %250 = vst [vmem:[#allocation2 + $0x28] sm:$0xff] 0.0
          %251 = vst [vmem:[#allocation2 + $0x30] sm:$0xff] 0.0
          %252 = vst [vmem:[#allocation2 + $0x38] sm:$0xff] 0.0
        $region44: #{tpu_custom_call.1} parent=31 // pred_fallthru
          _
        %v253 = vld [vmem:[%s217] sm:$0xff]
        %v254 = vld [vmem:[%s217 + $0x8] sm:$0xff]
        %v255 = vld [vmem:[%s217 + $0x10] sm:$0xff]
        %v256 = vld [vmem:[%s217 + $0x18] sm:$0xff]
        %v257 = vld [vmem:[%s217 + $0x20] sm:$0xff]
        %v258 = vld [vmem:[%s217 + $0x28] sm:$0xff]
        %v259 = vld [vmem:[%s217 + $0x30] sm:$0xff]
        %v260 = vld [vmem:[%s217 + $0x38] sm:$0xff]
        %v261 = vld [vmem:[%s217 + $0x40] sm:$0xff]
        %v262 = vld [vmem:[%s217 + $0x48] sm:$0xff]
        %v263 = vld [vmem:[%s217 + $0x50] sm:$0xff]
        %v264 = vld [vmem:[%s217 + $0x58] sm:$0xff]
        %v265 = vld [vmem:[%s217 + $0x60] sm:$0xff]
        %v266 = vld [vmem:[%s217 + $0x68] sm:$0xff]
        %v267 = vld [vmem:[%s217 + $0x70] sm:$0xff]
        %v268 = vld [vmem:[%s217 + $0x78] sm:$0xff]
        %v269 = vld [vmem:[%s217 + $0x80] sm:$0xff]
        %v270 = vld [vmem:[%s217 + $0x88] sm:$0xff]
        %v271 = vld [vmem:[%s217 + $0x90] sm:$0xff]
        %v272 = vld [vmem:[%s217 + $0x98] sm:$0xff]
        %v273 = vld [vmem:[%s217 + $0xa0] sm:$0xff]
        %v274 = vld [vmem:[%s217 + $0xa8] sm:$0xff]
        %v275 = vld [vmem:[%s217 + $0xb0] sm:$0xff]
        %v276 = vld [vmem:[%s217 + $0xb8] sm:$0xff]
        %v277 = vld [vmem:[%s217 + $0xc0] sm:$0xff]
        %v278 = vld [vmem:[%s217 + $0xc8] sm:$0xff]
        %v279 = vld [vmem:[%s217 + $0xd0] sm:$0xff]
        %v280 = vld [vmem:[%s217 + $0xd8] sm:$0xff]
        %v281 = vld [vmem:[%s217 + $0xe0] sm:$0xff]
        %v282 = vld [vmem:[%s217 + $0xe8] sm:$0xff]
        %v283 = vld [vmem:[%s217 + $0xf0] sm:$0xff]
        %v284 = vld [vmem:[%s217 + $0xf8] sm:$0xff]
        %v285 = vld [vmem:[#allocation2] sm:$0xff]
        %v286 = vld [vmem:[#allocation2 + $0x8] sm:$0xff]
        %v287 = vld [vmem:[#allocation2 + $0x10] sm:$0xff]
        %v288 = vld [vmem:[#allocation2 + $0x18] sm:$0xff]
        %v289 = vld [vmem:[#allocation2 + $0x20] sm:$0xff]
        %v290 = vld [vmem:[#allocation2 + $0x28] sm:$0xff]
        %v291 = vld [vmem:[#allocation2 + $0x30] sm:$0xff]
        %v292 = vld [vmem:[#allocation2 + $0x38] sm:$0xff]
        %v293 = vadd.f32 %v253, %v254
        %v294 = vadd.f32 %v293, %v255
        %v295 = vadd.f32 %v294, %v256
        %v296 = vadd.f32 %v257, %v258
        %v297 = vadd.f32 %v296, %v259
        %v298 = vadd.f32 %v297, %v260
        %v299 = vadd.f32 %v261, %v262
        %v300 = vadd.f32 %v299, %v263
        %v301 = vadd.f32 %v300, %v264
        %v302 = vadd.f32 %v265, %v266
        %v303 = vadd.f32 %v302, %v267
        %v304 = vadd.f32 %v303, %v268
        %v305 = vadd.f32 %v269, %v270
        %v306 = vadd.f32 %v305, %v271
        %v307 = vadd.f32 %v306, %v272
        %v308 = vadd.f32 %v273, %v274
        %v309 = vadd.f32 %v308, %v275
        %v310 = vadd.f32 %v309, %v276
        %v311 = vadd.f32 %v277, %v278
        %v312 = vadd.f32 %v311, %v279
        %v313 = vadd.f32 %v312, %v280
        %v314 = vadd.f32 %v281, %v282
        %v315 = vadd.f32 %v314, %v283
        %v316 = vadd.f32 %v315, %v284
        %v317 = vmul.f32 %v295, 0.0078125
        %v318 = vmul.f32 %v298, 0.0078125
        %v319 = vmul.f32 %v301, 0.0078125
        %v320 = vmul.f32 %v304, 0.0078125
        %v321 = vmul.f32 %v307, 0.0078125
        %v322 = vmul.f32 %v310, 0.0078125
        %v323 = vmul.f32 %v313, 0.0078125
        %v324 = vmul.f32 %v316, 0.0078125
        %v325 = vadd.f32 %v285, %v317
        %v326 = vadd.f32 %v286, %v318
        %v327 = vadd.f32 %v287, %v319
        %v328 = vadd.f32 %v288, %v320
        %v329 = vadd.f32 %v289, %v321
        %v330 = vadd.f32 %v290, %v322
        %v331 = vadd.f32 %v291, %v323
        %v332 = vadd.f32 %v292, %v324
        %333 = vst [vmem:[#allocation2] sm:$0xff] %v325
        %334 = vst [vmem:[#allocation2 + $0x8] sm:$0xff] %v326
        %335 = vst [vmem:[#allocation2 + $0x10] sm:$0xff] %v327
        %336 = vst [vmem:[#allocation2 + $0x18] sm:$0xff] %v328
        %337 = vst [vmem:[#allocation2 + $0x20] sm:$0xff] %v329
        %338 = vst [vmem:[#allocation2 + $0x28] sm:$0xff] %v330
        %339 = vst [vmem:[#allocation2 + $0x30] sm:$0xff] %v331
        %340 = vst [vmem:[#allocation2 + $0x38] sm:$0xff] %v332
        %p341 = scmp.eq.s32.totalorder %s24, 3
        // Predicated region
        $region45: #{tpu_custom_call.1} parent=31 // pred_check
          %p342 = pneg %p341
        $region46: #{tpu_custom_call.1} parent=31 // pred_check_branch
          %344 = sbr.rel (%p342) target = $region48
        $region47: #{tpu_custom_call.1} parent=31 // pred_region
          %v345 = vld [vmem:[#allocation2] sm:$0xff]
          %v346 = vld [vmem:[#allocation2 + $0x8] sm:$0xff]
          %v347 = vld [vmem:[#allocation2 + $0x10] sm:$0xff]
          %v348 = vld [vmem:[#allocation2 + $0x18] sm:$0xff]
          %v349 = vld [vmem:[#allocation2 + $0x20] sm:$0xff]
          %v350 = vld [vmem:[#allocation2 + $0x28] sm:$0xff]
          %v351 = vld [vmem:[#allocation2 + $0x30] sm:$0xff]
          %v352 = vld [vmem:[#allocation2 + $0x38] sm:$0xff]
          %v353 = vrot.slane %v345, 4
          %v354 = vadd.f32 %v345, %v353
          %v355 = vrot.slane %v354, 2
          %v356 = vadd.f32 %v354, %v355
          %v357 = vrot.slane %v356, 1
          %v358 = vadd.f32 %v356, %v357
          %v359 = vrot.slane %v346, 4
          %v360 = vadd.f32 %v346, %v359
          %v361 = vrot.slane %v360, 2
          %v362 = vadd.f32 %v360, %v361
          %v363 = vrot.slane %v362, 1
          %v364 = vadd.f32 %v362, %v363
          %v365 = vrot.slane %v347, 4
          %v366 = vadd.f32 %v347, %v365
          %v367 = vrot.slane %v366, 2
          %v368 = vadd.f32 %v366, %v367
          %v369 = vrot.slane %v368, 1
          %v370 = vadd.f32 %v368, %v369
          %v371 = vrot.slane %v348, 4
          %v372 = vadd.f32 %v348, %v371
          %v373 = vrot.slane %v372, 2
          %v374 = vadd.f32 %v372, %v373
          %v375 = vrot.slane %v374, 1
          %v376 = vadd.f32 %v374, %v375
          %v377 = vrot.slane %v349, 4
          %v378 = vadd.f32 %v349, %v377
          %v379 = vrot.slane %v378, 2
          %v380 = vadd.f32 %v378, %v379
          %v381 = vrot.slane %v380, 1
          %v382 = vadd.f32 %v380, %v381
          %v383 = vrot.slane %v350, 4
          %v384 = vadd.f32 %v350, %v383
          %v385 = vrot.slane %v384, 2
          %v386 = vadd.f32 %v384, %v385
          %v387 = vrot.slane %v386, 1
          %v388 = vadd.f32 %v386, %v387
          %v389 = vrot.slane %v351, 4
          %v390 = vadd.f32 %v351, %v389
          %v391 = vrot.slane %v390, 2
          %v392 = vadd.f32 %v390, %v391
          %v393 = vrot.slane %v392, 1
          %v394 = vadd.f32 %v392, %v393
          %v395 = vrot.slane %v352, 4
          %v396 = vadd.f32 %v352, %v395
          %v397 = vrot.slane %v396, 2
          %v398 = vadd.f32 %v396, %v397
          %v399 = vrot.slane %v398, 1
          %v400 = vadd.f32 %v398, %v399
          %v401 = vld [vmem:[#allocation6] sm:$0xff]
          %v402 = vld [vmem:[#allocation6 + $0x8] sm:$0xff]
          %v403 = vld [vmem:[#allocation6 + $0x10] sm:$0xff]
          %v404 = vld [vmem:[#allocation6 + $0x18] sm:$0xff]
          %v405 = vld [vmem:[#allocation6 + $0x20] sm:$0xff]
          %v406 = vld [vmem:[#allocation6 + $0x28] sm:$0xff]
          %v407 = vld [vmem:[#allocation6 + $0x30] sm:$0xff]
          %v408 = vld [vmem:[#allocation6 + $0x38] sm:$0xff]
          %v409 = vld [vmem:[#allocation6 + $0x40] sm:$0xff]
          %v410 = vld [vmem:[#allocation6 + $0x48] sm:$0xff]
          %v411 = vld [vmem:[#allocation6 + $0x50] sm:$0xff]
          %v412 = vld [vmem:[#allocation6 + $0x58] sm:$0xff]
          %v413 = vld [vmem:[#allocation6 + $0x60] sm:$0xff]
          %v414 = vld [vmem:[#allocation6 + $0x68] sm:$0xff]
          %v415 = vld [vmem:[#allocation6 + $0x70] sm:$0xff]
          %v416 = vld [vmem:[#allocation6 + $0x78] sm:$0xff]
          %v417 = vld [vmem:[%s2] sm:$0x1]
          %v419 = vlaneseq
          %v420 = vshrl.u32 %v419, 7
          %v421 = vsub.s32 0, %v420
          %v422 = vrot.slane %v417, %v421
          %vm432 = vcmask 1041409
          %v433 = vsel %vm432, %v364, %v358
          %vm434 = vcmask 1042434
          %v435 = vsel %vm434, %v370, %v433
          %vm436 = vcmask 1043459
          %v437 = vsel %vm436, %v376, %v435
          %vm438 = vcmask 1044484
          %v439 = vsel %vm438, %v382, %v437
          %vm440 = vcmask 1045509
          %v441 = vsel %vm440, %v388, %v439
          %vm442 = vcmask 1046534
          %v443 = vsel %vm442, %v394, %v441
          %vm444 = vcmask 1047559
          %v445 = vsel %vm444, %v400, %v443
          %447 = vmatprep.subr.mxu0 0.0
          %448 = vmatpush1.msra.mxu0 %v416
          %449 = vmatprep.subr.mxu0 0.0
          %450 = vmatpush1.msra.mxu0 %v415
          %451 = vmatprep.subr.mxu0 0.0
          %452 = vmatpush1.msra.mxu0 %v414
          %453 = vmatprep.subr.mxu0 0.0
          %454 = vmatpush1.msra.mxu0 %v413
          %455 = vmatprep.subr.mxu0 0.0
          %456 = vmatpush1.msra.mxu0 %v412
          %457 = vmatprep.subr.mxu0 0.0
          %458 = vmatpush1.msra.mxu0 %v411
          %459 = vmatprep.subr.mxu0 0.0
          %460 = vmatpush1.msra.mxu0 %v410
          %461 = vmatprep.subr.mxu0 0.0
          %462 = vmatpush1.msra.mxu0 %v409
          %463 = vmatprep.subr.mxu0 0.0
          %464 = vmatpush1.msra.mxu0 %v408
          %465 = vmatprep.subr.mxu0 0.0
          %466 = vmatpush1.msra.mxu0 %v407
          %467 = vmatprep.subr.mxu0 0.0
          %468 = vmatpush1.msra.mxu0 %v406
          %469 = vmatprep.subr.mxu0 0.0
          %470 = vmatpush1.msra.mxu0 %v405
          %471 = vmatprep.subr.mxu0 0.0
          %472 = vmatpush1.msra.mxu0 %v404
          %473 = vmatprep.subr.mxu0 0.0
          %474 = vmatpush1.msra.mxu0 %v403
          %475 = vmatprep.subr.mxu0 0.0
          %476 = vmatpush1.msra.mxu0 %v402
          %477 = vmatprep.subr.mxu0 0.0
          %478 = vmatpush1.msra.mxu0 %v401
          %479 = vmatprep.subr.mxu0 0.0
          %480 = vmatpush2.msra.mxu0 0.0
          %481 = vmatprep.subr.mxu0 0.0
          %482 = vmatpush2.msra.mxu0 0.0
          %483 = vmatprep.subr.mxu0 0.0
          %484 = vmatpush2.msra.mxu0 0.0
          %485 = vmatprep.subr.mxu0 0.0
          %486 = vmatpush2.msra.mxu0 0.0
          %487 = vmatprep.subr.mxu0 0.0
          %488 = vmatpush2.msra.mxu0 0.0
          %489 = vmatprep.subr.mxu0 0.0
          %490 = vmatpush2.msra.mxu0 0.0
          %491 = vmatprep.subr.mxu0 0.0
          %492 = vmatpush2.msra.mxu0 0.0
          %493 = vmatprep.subr.mxu0 0.0
          %494 = vmatpush2.msra.mxu0 0.0
          %495 = vmatprep.subr.mxu0 0.0
          %496 = vmatpush2.msra.mxu0 0.0
          %497 = vmatprep.subr.mxu0 0.0
          %498 = vmatpush2.msra.mxu0 0.0
          %499 = vmatprep.subr.mxu0 0.0
          %500 = vmatpush2.msra.mxu0 0.0
          %501 = vmatprep.subr.mxu0 0.0
          %502 = vmatpush2.msra.mxu0 0.0
          %503 = vmatprep.subr.mxu0 0.0
          %504 = vmatpush2.msra.mxu0 0.0
          %505 = vmatprep.subr.mxu0 0.0
          %506 = vmatpush2.msra.mxu0 0.0
          %507 = vmatprep.subr.mxu0 0.0
          %508 = vmatpush2.msra.mxu0 0.0
          %509 = vmatprep.subr.mxu0 0.0
          %510 = vmatpush2.msra.mxu0 0.0
          %511 = vmatprep.mubr.f32.mxu0 0.0
          %512 = vmatmul.mubr.f32.gmra.mxu0 %v445
          %v513 = vpop.f32.mrf.mxu0
          %v514 = vadd.f32 %v422, %v513
          %v515 = vpop.f32.mrf.mxu0
          %516 = vdwg.mxu0
          %517 = vst [vmem:[#allocation8] sm:$0xff] %v514
        $region48: #{tpu_custom_call.1} parent=31 // pred_fallthru
          _
        // Predicated region
        $region49: #{tpu_custom_call.1} parent=31 // pred_check
          %p518 = pneg %p119
        $region50: #{tpu_custom_call.1} parent=31 // pred_check_branch
          %520 = sbr.rel (%p518) target = $region52
        $region51: #{tpu_custom_call.1} parent=31 // pred_region
          %s522 = ssub.s32 128, 128
          %523 = vsyncadd [#allocation5], %s522
          %s524 = smul.addr %s23, 128
          %s525 = scalar_lea.hbm %s3, %s524
          %s527 = sshll.u32 [#allocation8], 4
          %s528 = int_to_ptr.vmem [resolvable:$true] %s527
          %530 = dma.vmem_to_hbm [thread:$0]  %s528, 128, %s525, [#allocation5]
        $region52: #{tpu_custom_call.1} parent=31 // pred_fallthru
          _
        // Predicated region
        $region53: #{tpu_custom_call.1} parent=31 // pred_check
          %p531 = pneg %p119
        $region54: #{tpu_custom_call.1} parent=31 // pred_check_branch
          %533 = sbr.rel (%p531) target = $region56
        $region55: #{tpu_custom_call.1} parent=31 // pred_region
          %534 = dma.done [#allocation5], 128
        $region56: #{tpu_custom_call.1} parent=31 // pred_fallthru
          _
      $region32: #{tpu_custom_call.1} parent=5 // pred_fallthru
        _
      %p535 = scmp.le.s32.totalorder 2, %s14
      // Predicated region
      $region57: #{tpu_custom_call.1} parent=5 // pred_check
        %p536 = pneg %p535
      $region58: #{tpu_custom_call.1} parent=5 // pred_check_branch
        %538 = sbr.rel (%p536) target = $region60
      $region59: #{tpu_custom_call.1} parent=5 // pred_region
        %s539 = ssub.s32 %s14, 2
      $region60: #{tpu_custom_call.1} parent=5 // pred_fallthru
        _
    $region6: #{tpu_custom_call.1} parent=1 // loop_footer
      %s18 = sadd.s32 1, %s14
    $region7: #{tpu_custom_call.1} parent=1 // loop_footer_branch
      %13 = sbr.rel target = $region3
    $region8: #{tpu_custom_call.1} parent=1 // loop_exit
      _
    %540 = vsyncpa [#allocation4], 1
    %s541 = scalar_lea.sflag [#allocation4], 1
    %542 = vsyncpa %s541, 1
    %543 = vsyncpa [#allocation7], 1
    %544 = vsyncpa [#allocation5], 1
    %s545 = scalar_lea.sflag [#allocation5], 1
    %546 = vsyncpa %s545, 1

</llo_original>
